<compile_context>
chip_gen: v6e
topology: v6e:2x2x1
jax: 0.10.0
libtpu: 0.0.40
codegen_flags: <defaults>
</compile_context>

<pallas_src>
import math

import jax
import jax.numpy as jnp
from jax import lax
from jax.experimental import pallas as pl
from jax.experimental.pallas import tpu as pltpu


def _rope_kernel(x_ref, cos_ref, sin_ref, o_ref):
    """x_ref/cos_ref/sin_ref/o_ref: (rows, lanes), lanes = fold * d_k.

    sin_ref has the interleave sign baked in (-sin on even lanes, +sin on odd).
    The interleaved pair swap  x2[2i] = x[2i+1], x2[2i+1] = x[2i]  is built from
    two lane rotations (XLU slot, otherwise idle) + one parity select (VPU).
    Wrap-around lanes produced by the rolls are never selected (even lanes use
    the +1 neighbor, odd lanes the -1 neighbor), so folding whole positions
    into the lane axis stays exact as long as d_k is even.
    """
    x = x_ref[...].astype(jnp.float32)
    cos = cos_ref[...]
    sin = sin_ref[...]  # sign-baked

    L = x.shape[-1]
    x_m1 = pltpu.roll(x, shift=1, axis=1)      # value at lane i is x[i-1]
    x_p1 = pltpu.roll(x, shift=L - 1, axis=1)  # value at lane i is x[i+1]
    lane = lax.broadcasted_iota(jnp.int32, x.shape, dimension=1)
    x2 = jnp.where((lane & 1) == 0, x_p1, x_m1)

    o_ref[...] = (x * cos + x2 * sin).astype(o_ref.dtype)


def make_rope_tables(theta: float, d_k: int, max_seq_len: int):
    """Deterministic cos/sin tables, matching the PyTorch __init__."""
    k = jnp.arange(0, d_k, 2, dtype=jnp.float32)
    ang = jnp.arange(max_seq_len, dtype=jnp.float32)[:, None] / jnp.power(
        jnp.float32(theta), k / jnp.float32(d_k)
    )
    ang = jnp.repeat(ang, 2, axis=-1)  # repeat_interleave(·, 2) -> (max_seq_len, d_k)
    return jnp.cos(ang), jnp.sin(ang)


def _choose_fold(S: int, D: int) -> int:
    """Smallest f with (f * D) % 128 == 0 and f | S; else 1."""
    f = 128 // math.gcd(D, 128)
    if f <= S and S % f == 0:
        return f
    return 1


def _choose_row_tile(R: int) -> int:
    """Largest convenient row tile: full R if small, else a /8 divisor <= 1024."""
    if R <= 1024:
        return R
    for t in range(1024, 7, -1):
        if R % t == 0 and t % 8 == 0:
            return t
    return R


def rope_forward(x, cos_table, sin_table, token_positions=None):
    """x: (*batch, seq_len, d_k). Returns same shape/dtype."""
    *batch, S, D = x.shape
    assert D % 2 == 0, "d_k must be even for interleaved RoPE"
    B = 1
    for b in batch:
        B *= b

    # Glue: per-position cos/sin rows (S, D). Skip the gather on the common path.
    if token_positions is None:
        cos_sel = cos_table[:S].astype(jnp.float32)
        sin_sel = sin_table[:S].astype(jnp.float32)
    else:
        cos_sel = cos_table[token_positions].astype(jnp.float32)
        sin_sel = sin_table[token_positions].astype(jnp.float32)

    # Bake the interleave sign into sin (-sin on even lanes, +sin on odd).
    signs = jnp.where(jnp.arange(D) % 2 == 0, -1.0, 1.0).astype(jnp.float32)
    sin_sel = sin_sel * signs

    # Fold f sequence positions into the lane axis -> lane width f*D (128-mult
    # when possible). Contiguous reshape only; cos/sin reshape identically.
    f = _choose_fold(S, D)
    R = S // f
    L = f * D

    x_flat = x.reshape(B, R, L)
    cos_sel = cos_sel.reshape(R, L)
    sin_sel = sin_sel.reshape(R, L)

    tR = _choose_row_tile(R)
    grid = (R // tR, B)  # row axis outer -> cos/sin blocks resident across B

    out_flat = pl.pallas_call(
        _rope_kernel,
        out_shape=jax.ShapeDtypeStruct((B, R, L), x.dtype),
        grid_spec=pltpu.PrefetchScalarGridSpec(
            num_scalar_prefetch=0,
            grid=grid,
            in_specs=[
                pl.BlockSpec((None, tR, L), lambda r, b: (b, r, 0)),  # x (batch squeezed)
                pl.BlockSpec((tR, L), lambda r, b: (r, 0)),           # cos
                pl.BlockSpec((tR, L), lambda r, b: (r, 0)),           # sin (signed)
            ],
            out_specs=pl.BlockSpec((None, tR, L), lambda r, b: (b, r, 0)),
        ),
        compiler_params=pltpu.CompilerParams(
            dimension_semantics=("parallel", "parallel"),
            vmem_limit_bytes=32 * 1024 * 1024,
        ),
    )(x_flat, cos_sel, sin_sel)

    return out_flat.reshape(*batch, S, D)


def rope_reference(x, cos_table, sin_table, token_positions=None):
    """Pure-JAX reference mirroring the PyTorch forward."""
    *batch, S, D = x.shape
    inds = jnp.flip(jnp.arange(D).reshape(-1, 2), axis=-1).reshape(-1)
    signs = jnp.ones((D // 2, 2), dtype=x.dtype).at[:, 0].multiply(-1).reshape(-1)
    x2 = jnp.take(x, inds, axis=-1) * signs
    if token_positions is None:
        token_positions = jnp.arange(S, dtype=jnp.int32)
    return x * cos_table[token_positions] + x2 * sin_table[token_positions]


if __name__ == "__main__":
    theta = 10000.0
    d_k = 32
    max_seq_len = 64
    batch = 2
    seq_len = 8

    cos_table, sin_table = make_rope_tables(theta, d_k, max_seq_len)

    key = jax.random.PRNGKey(0)
    kx, kp = jax.random.split(key)
    x = jax.random.normal(kx, (batch, seq_len, d_k), dtype=jnp.float32)

    # Default-position path.
    out = rope_forward(x, cos_table, sin_table)
    out = jax.block_until_ready(out)
    ref = rope_reference(x, cos_table, sin_table)
    assert out.shape == x.shape and out.dtype == x.dtype
    assert jnp.allclose(out, ref, atol=1e-5, rtol=1e-5), "mismatch vs reference"

    # Explicit token_positions path.
    positions = jax.random.randint(kp, (seq_len,), 0, max_seq_len, dtype=jnp.int32)
    out_p = jax.block_until_ready(rope_forward(x, cos_table, sin_table, positions))
    ref_p = rope_reference(x, cos_table, sin_table, positions)
    assert jnp.allclose(out_p, ref_p, atol=1e-5, rtol=1e-5), "mismatch (positions)"

    print("KERNEL_OK")
</pallas_src>

<mosaic_0001>
module attributes {stable_mosaic.version = 11 : i64} {
  func.func @_rope_kernel(%arg0: i32, %arg1: i32, %arg2: memref<1x2x128xf32, #tpu.memory_space<vmem>>, %arg3: memref<2x128xf32, #tpu.memory_space<vmem>>, %arg4: memref<2x128xf32, #tpu.memory_space<vmem>>, %arg5: memref<1x2x128xf32, #tpu.memory_space<vmem>>) attributes {dimension_semantics = [#tpu.dimension_semantics<parallel>, #tpu.dimension_semantics<parallel>], iteration_bounds = array<i64: 1, 2>, scalar_prefetch = 0 : i64, scratch_operands = 0 : i64, tpu.core_type = #tpu.core_type<tc>, window_params = [{transform_indices = @transform_0, window_bounds = array<i64: 1, 2, 128>}, {transform_indices = @transform_1, window_bounds = array<i64: 2, 128>}, {transform_indices = @transform_2, window_bounds = array<i64: 2, 128>}, {transform_indices = @transform_3, window_bounds = array<i64: 1, 2, 128>}]} {
    %c0 = arith.constant 0 : index
    %c0_0 = arith.constant 0 : index
    %c0_1 = arith.constant 0 : index
    %0 = vector.load %arg2[%c0, %c0_0, %c0_1] : memref<1x2x128xf32, #tpu.memory_space<vmem>>, vector<1x2x128xf32>
    %1 = vector.shape_cast %0 : vector<1x2x128xf32> to vector<2x128xf32>
    %c0_2 = arith.constant 0 : index
    %c0_3 = arith.constant 0 : index
    %2 = vector.load %arg3[%c0_2, %c0_3] : memref<2x128xf32, #tpu.memory_space<vmem>>, vector<2x128xf32>
    %c0_4 = arith.constant 0 : index
    %c0_5 = arith.constant 0 : index
    %3 = vector.load %arg4[%c0_4, %c0_5] : memref<2x128xf32, #tpu.memory_space<vmem>>, vector<2x128xf32>
    %c1_i32 = arith.constant 1 : i32
    %4 = tpu.dynamic_rotate %1 by %c1_i32 dim 1 : vector<2x128xf32>, i32 -> vector<2x128xf32>
    %c127_i32 = arith.constant 127 : i32
    %5 = tpu.dynamic_rotate %1 by %c127_i32 dim 1 : vector<2x128xf32>, i32 -> vector<2x128xf32>
    %6 = tpu.iota {dimensions = array<i32: 1>} : vector<2x128xi32>
    %c1_i32_6 = arith.constant 1 : i32
    %7 = vector.broadcast %c1_i32_6 : i32 to vector<2x128xi32>
    %8 = arith.andi %6, %7 : vector<2x128xi32>
    %c0_i32 = arith.constant 0 : i32
    %9 = vector.broadcast %c0_i32 : i32 to vector<2x128xi32>
    %10 = arith.cmpi eq, %8, %9 : vector<2x128xi32>
    %11 = arith.select %10, %5, %4 : vector<2x128xi1>, vector<2x128xf32>
    %12 = arith.mulf %1, %2 : vector<2x128xf32>
    %13 = arith.mulf %11, %3 : vector<2x128xf32>
    %14 = arith.addf %12, %13 : vector<2x128xf32>
    %c0_7 = arith.constant 0 : index
    %c0_8 = arith.constant 0 : index
    %c0_9 = arith.constant 0 : index
    %15 = vector.load %arg5[%c0_7, %c0_8, %c0_9] : memref<1x2x128xf32, #tpu.memory_space<vmem>>, vector<1x2x128xf32>
    %16 = vector.shape_cast %15 : vector<1x2x128xf32> to vector<2x128xf32>
    %17 = vector.shape_cast %14 : vector<2x128xf32> to vector<1x2x128xf32>
    tpu.vector_store %arg5[%c0_7, %c0_8, %c0_9], %17 {strides = array<i32>} : memref<1x2x128xf32, #tpu.memory_space<vmem>>, vector<1x2x128xf32>,
    return
  }
  func.func @transform_0(%arg0: i32, %arg1: i32) -> (i32, i32, i32) {
    %c0_i32 = arith.constant 0 : i32
    %c0_i32_0 = arith.constant 0 : i32
    return %arg1, %arg0, %c0_i32 : i32, i32, i32
  }
  func.func @transform_1(%arg0: i32, %arg1: i32) -> (i32, i32) {
    %c0_i32 = arith.constant 0 : i32
    %c0_i32_0 = arith.constant 0 : i32
    return %arg0, %c0_i32 : i32, i32
  }
  func.func @transform_2(%arg0: i32, %arg1: i32) -> (i32, i32) {
    %c0_i32 = arith.constant 0 : i32
    %c0_i32_0 = arith.constant 0 : i32
    return %arg0, %c0_i32 : i32, i32
  }
  func.func @transform_3(%arg0: i32, %arg1: i32) -> (i32, i32, i32) {
    %c0_i32 = arith.constant 0 : i32
    %c0_i32_0 = arith.constant 0 : i32
    return %arg1, %arg0, %c0_i32 : i32, i32, i32
  }
}

</mosaic_0001>

<llo_original>
// kernel: tpu_custom_call.1
$region0: #{tpu_custom_call.1}
  #allocation0 [shape = 'u32[]', space=smem, size = 0x4, offset = 0x4, fixed_abs, tag = 'smem constant byte address 0x4 - core index']
  #allocation1 [shape = 'u32[144,128]{1,0:T(1,128)}', space=vmem, size = 0x12000, scoped, tag = 'internal scratch']
  %s0 = inlined_call_operand.hbm [shape: f32[2,2,128], index: 0, kind: input, shape index: {}]
  %s1 = inlined_call_operand.hbm [shape: f32[2,128], index: 1, kind: input, shape index: {}]
  %s2 = inlined_call_operand.vmem [shape: f32[2,128], index: 2, kind: input, shape index: {}]
  %s3 = inlined_call_operand.hbm [shape: f32[2,2,128], index: 3, kind: output, shape index: {}]
  %s4 = sld [smem:[#allocation0]]
  $region53: #{tpu_custom_call.1} parent=0
    _
  %s6 = ssub.s32 1, %s4
  %s7 = scalar_select 0, %s6, %s4
  $region1: #{tpu_custom_call.1} parent=0
    #allocation2 [shape = 'u8[2048]{0}', space=vmem, size = 0x800, scoped, tag = 'input window, operand 0']
    #allocation3 [shape = 's32[2]{0}', space=sflag, size = 0x8, scoped, tag = 'scoped memory for tpu_custom_call.1']
    #allocation4 [shape = 's32[2]{0}', space=sflag, size = 0x8, scoped, tag = 'scoped memory for tpu_custom_call.1']
    #allocation5 [shape = 'u8[1024]{0}', space=vmem, size = 0x400, scoped, tag = 'input window, operand 1, single buffered']
    #allocation6 [shape = 's32[1]{0}', space=sflag, size = 0x4, scoped, tag = 'scoped memory for tpu_custom_call.1']
    #allocation7 [shape = 'u8[2048]{0}', space=vmem, size = 0x800, scoped, tag = 'output window, operand 0']
    %8 = vsyncpa [#allocation3], 0
    %s9 = scalar_lea.sflag [#allocation3], 1
    %10 = vsyncpa %s9, 0
    %11 = vsyncpa [#allocation6], 0
    %12 = vsyncpa [#allocation4], 0
    %s13 = scalar_lea.sflag [#allocation4], 1
    %14 = vsyncpa %s13, 0
    loop: start=0, step=1, limit=4
    $region2: #{tpu_custom_call.1} parent=1 // loop_pre_header
      _
    $region3: #{tpu_custom_call.1} parent=1 // loop_header
      %s16 = sphi 0, %s20
      %p17 = scmp.ge.s32.totalorder %s16, 4
      %s23 = sphi 0, %s35
      %s24 = sphi 0, %s31
      %s25 = sphi 0, %s23
      %s26 = sphi 0, %s24
      %s27 = sphi 0, %s25
      %s28 = sphi 0, %s26
      %s40 = sphi 0, %s42
      %s43 = sphi 0, %s40
      %s44 = sphi 0, %s43
      %s60 = sphi 0, %s44
      %s66 = sphi 0, %s68
      %s69 = sphi 0, %s66
      %s70 = sphi 0, %s69
      %s86 = sphi 0, %s70
      %s92 = sphi 0, %s94
      %s95 = sphi 0, %s92
      %s96 = sphi 0, %s95
      %s112 = sphi 0, %s96
      %s120 = sphi 0, %s122
      %s123 = sphi 0, %s120
      %s124 = sphi 0, %s123
      %s140 = sphi 0, %s124
    $region4: #{tpu_custom_call.1} parent=1 // loop_header_branch
      %19 = sbr.rel (%p17) target = $region8
    $region5: #{tpu_custom_call.1} parent=1 // loop_body
      %s21 = ssub.s32 %s16, 1
      %s22 = ssub.s32 %s16, 2
      %s29 = sadd.s32 1, %s24
      %p30 = scmp.ge.s32.totalorder %s29, 2
      %s31 = scalar_select %p30, 0, %s29
      %s32 = sadd.s32 1, %s23
      %s33 = scalar_select %p30, %s32, %s23
      %p34 = scmp.ge.s32.totalorder %s33, 1
      %s35 = scalar_select %p34, 0, %s33
      %s36 = ssub.s32 %s24, %s31
      %s37 = ssub.s32 %s23, %s35
      %s38 = sor.u32 %s36, %s37
      %p39 = scmp.eq.s32.totalorder %s38, 0
      %s41 = sadd.s32 %s40, 1
      %s42 = scalar_select %p39, %s40, %s41
      %p45 = pneg %p39
      %p46 = scmp.eq.s32.totalorder %s16, 1
      %p47 = por %p45, %p46
      %p48 = scmp.ne.s32.totalorder %s40, %s43
      %p49 = scmp.eq.s32.totalorder %s16, 0
      %p50 = por %p48, %p49
      %p51 = scmp.ne.s32.totalorder %s40, %s43
      %p52 = scmp.eq.s32.totalorder %s21, 1
      %p53 = por %p51, %p52
      %p54 = scmp.ne.s32.totalorder %s43, %s44
      %p55 = scmp.eq.s32.totalorder %s21, 0
      %p56 = por %p54, %p55
      %p57 = scmp.ne.s32.totalorder %s43, %s44
      %p58 = scmp.eq.s32.totalorder %s22, 1
      %p59 = por %p57, %p58
      %p61 = scmp.ne.s32.totalorder %s44, %s60
      %p62 = scmp.eq.s32.totalorder %s22, 0
      %p63 = por %p61, %p62
      %s64 = ssub.s32 %s23, %s35
      %p65 = scmp.eq.s32.totalorder %s64, 0
      %s67 = sadd.s32 %s66, 1
      %s68 = scalar_select %p65, %s66, %s67
      %p71 = pneg %p65
      %p72 = scmp.eq.s32.totalorder %s16, 1
      %p73 = por %p71, %p72
      %p74 = scmp.ne.s32.totalorder %s66, %s69
      %p75 = scmp.eq.s32.totalorder %s16, 0
      %p76 = por %p74, %p75
      %p77 = scmp.ne.s32.totalorder %s66, %s69
      %p78 = scmp.eq.s32.totalorder %s21, 1
      %p79 = por %p77, %p78
      %p80 = scmp.ne.s32.totalorder %s69, %s70
      %p81 = scmp.eq.s32.totalorder %s21, 0
      %p82 = por %p80, %p81
      %p83 = scmp.ne.s32.totalorder %s69, %s70
      %p84 = scmp.eq.s32.totalorder %s22, 1
      %p85 = por %p83, %p84
      %p87 = scmp.ne.s32.totalorder %s70, %s86
      %p88 = scmp.eq.s32.totalorder %s22, 0
      %p89 = por %p87, %p88
      %s90 = ssub.s32 %s23, %s35
      %p91 = scmp.eq.s32.totalorder %s90, 0
      %s93 = sadd.s32 %s92, 1
      %s94 = scalar_select %p91, %s92, %s93
      %p97 = pneg %p91
      %p98 = scmp.eq.s32.totalorder %s16, 1
      %p99 = por %p97, %p98
      %p100 = scmp.ne.s32.totalorder %s92, %s95
      %p101 = scmp.eq.s32.totalorder %s16, 0
      %p102 = por %p100, %p101
      %p103 = scmp.ne.s32.totalorder %s92, %s95
      %p104 = scmp.eq.s32.totalorder %s21, 1
      %p105 = por %p103, %p104
      %p106 = scmp.ne.s32.totalorder %s95, %s96
      %p107 = scmp.eq.s32.totalorder %s21, 0
      %p108 = por %p106, %p107
      %p109 = scmp.ne.s32.totalorder %s95, %s96
      %p110 = scmp.eq.s32.totalorder %s22, 1
      %p111 = por %p109, %p110
      %p113 = scmp.ne.s32.totalorder %s96, %s112
      %p114 = scmp.eq.s32.totalorder %s22, 0
      %p115 = por %p113, %p114
      %s116 = ssub.s32 %s24, %s31
      %s117 = ssub.s32 %s23, %s35
      %s118 = sor.u32 %s116, %s117
      %p119 = scmp.eq.s32.totalorder %s118, 0
      %s121 = sadd.s32 %s120, 1
      %s122 = scalar_select %p119, %s120, %s121
      %p125 = pneg %p119
      %p126 = scmp.eq.s32.totalorder %s16, 1
      %p127 = por %p125, %p126
      %p128 = scmp.ne.s32.totalorder %s120, %s123
      %p129 = scmp.eq.s32.totalorder %s16, 0
      %p130 = por %p128, %p129
      %p131 = scmp.ne.s32.totalorder %s120, %s123
      %p132 = scmp.eq.s32.totalorder %s21, 1
      %p133 = por %p131, %p132
      %p134 = scmp.ne.s32.totalorder %s123, %s124
      %p135 = scmp.eq.s32.totalorder %s21, 0
      %p136 = por %p134, %p135
      %p137 = scmp.ne.s32.totalorder %s123, %s124
      %p138 = scmp.eq.s32.totalorder %s22, 1
      %p139 = por %p137, %p138
      %p141 = scmp.ne.s32.totalorder %s124, %s140
      %p142 = scmp.eq.s32.totalorder %s22, 0
      %p143 = por %p141, %p142
      %p144 = scmp.le.s32.totalorder 1, %s16
      %p145 = scmp.lt.s32.totalorder %s16, 3
      %p146 = pnand %p144, %p145
      %p147 = pneg %p146
      // Predicated region
      $region9: #{tpu_custom_call.1} parent=5 // pred_check
        _
      $region10: #{tpu_custom_call.1} parent=5 // pred_check_branch
        %149 = sbr.rel (%p146) target = $region12
      $region11: #{tpu_custom_call.1} parent=5 // pred_region
        %s150 = ssub.s32 %s16, 1
        // Predicated region
        $region13: #{tpu_custom_call.1} parent=11 // pred_check
          %p151 = pneg %p82
        $region14: #{tpu_custom_call.1} parent=11 // pred_check_branch
          %153 = sbr.rel (%p151) target = $region16
        $region15: #{tpu_custom_call.1} parent=11 // pred_region
          %s155 = ssub.s32 32, 32
          %156 = vsyncadd [#allocation6], %s155
          %s157 = smul.addr %s25, 32
          %s158 = scalar_lea.hbm %s1, %s157
          %s160 = sshll.u32 [#allocation5], 4
          %s161 = int_to_ptr.vmem [resolvable:$true] %s160
          %163 = dma.hbm_to_vmem [thread:$0]  %s158, 32, %s161, [#allocation6]
        $region16: #{tpu_custom_call.1} parent=11 // pred_fallthru
          _
        // Predicated region
        $region17: #{tpu_custom_call.1} parent=11 // pred_check
          %p164 = pneg %p108
        $region18: #{tpu_custom_call.1} parent=11 // pred_check_branch
          %166 = sbr.rel (%p164) target = $region20
        $region19: #{tpu_custom_call.1} parent=11 // pred_region
          %p167 = scmp.lt.s32.totalorder %s25, 0
          %s168 = scalar_select %p167, %s25, 0
          %s169 = smul.addr %s168, 2
          %s170 = scalar_lea.vmem %s2, %s169
        $region20: #{tpu_custom_call.1} parent=11 // pred_fallthru
          _
      $region12: #{tpu_custom_call.1} parent=5 // pred_fallthru
        _
      %p171 = scmp.lt.s32.totalorder %s16, 2
      // Predicated region
      $region21: #{tpu_custom_call.1} parent=5 // pred_check
        %p172 = pneg %p171
      $region22: #{tpu_custom_call.1} parent=5 // pred_check_branch
        %174 = sbr.rel (%p172) target = $region24
      $region23: #{tpu_custom_call.1} parent=5 // pred_region
        // Predicated region
        $region25: #{tpu_custom_call.1} parent=23 // pred_check
          %p175 = pneg %p50
        $region26: #{tpu_custom_call.1} parent=23 // pred_check_branch
          %177 = sbr.rel (%p175) target = $region28
        $region27: #{tpu_custom_call.1} parent=23 // pred_region
          %s178 = sand.u32 %s40, 1
          %s179 = scalar_lea.sflag [#allocation3], %s178
          %s180 = sand.u32 %s40, 1
          %s181 = smul.addr %s180, 2
          %s182 = scalar_lea.vmem [#allocation2], %s181
          %s184 = ssub.s32 32, 32
          %185 = vsyncadd %s179, %s184
          %s186 = sadd.s32 %s23, %s24
          %s187 = smul.addr %s186, 32
          %s188 = scalar_lea.hbm %s0, %s187
          %s190 = sshll.u32 %s182, 4
          %s191 = int_to_ptr.vmem [resolvable:$true] %s190
          %193 = dma.hbm_to_vmem [thread:$0]  %s188, 32, %s191, %s179
        $region28: #{tpu_custom_call.1} parent=23 // pred_fallthru
          _
      $region24: #{tpu_custom_call.1} parent=5 // pred_fallthru
        _
      %p194 = scmp.le.s32.totalorder 1, %s16
      %p195 = scmp.lt.s32.totalorder %s16, 3
      %p196 = pnand %p194, %p195
      %p197 = pneg %p196
      // Predicated region
      $region29: #{tpu_custom_call.1} parent=5 // pred_check
        _
      $region30: #{tpu_custom_call.1} parent=5 // pred_check_branch
        %199 = sbr.rel (%p196) target = $region32
      $region31: #{tpu_custom_call.1} parent=5 // pred_region
        %s200 = ssub.s32 %s16, 1
        %s201 = sand.u32 %s43, 1
        %s202 = scalar_lea.sflag [#allocation3], %s201
        %s203 = sand.u32 %s43, 1
        %s204 = smul.addr %s203, 2
        %s205 = scalar_lea.vmem [#allocation2], %s204
        // Predicated region
        $region33: #{tpu_custom_call.1} parent=31 // pred_check
          %p206 = pneg %p56
        $region34: #{tpu_custom_call.1} parent=31 // pred_check_branch
          %208 = sbr.rel (%p206) target = $region36
        $region35: #{tpu_custom_call.1} parent=31 // pred_region
          %209 = dma.done %s202, 32
        $region36: #{tpu_custom_call.1} parent=31 // pred_fallthru
          _
        // Predicated region
        $region37: #{tpu_custom_call.1} parent=31 // pred_check
          %p210 = pneg %p82
        $region38: #{tpu_custom_call.1} parent=31 // pred_check_branch
          %212 = sbr.rel (%p210) target = $region40
        $region39: #{tpu_custom_call.1} parent=31 // pred_region
          %213 = dma.done [#allocation6], 32
        $region40: #{tpu_custom_call.1} parent=31 // pred_fallthru
          _
        %s214 = sand.u32 %s43, 1
        %s215 = scalar_lea.sflag [#allocation3], %s214
        %s216 = sand.u32 %s43, 1
        %s217 = smul.addr %s216, 2
        %s218 = scalar_lea.vmem [#allocation2], %s217
        %p219 = pneg %p56
        %p220 = pneg %p53
        %p221 = pneg %p82
        %p222 = pneg %p79
        %p223 = scmp.lt.s32.totalorder %s25, 0
        %s224 = scalar_select %p223, %s25, 0
        %s225 = smul.addr %s224, 2
        %s226 = scalar_lea.vmem %s2, %s225
        %p227 = pneg %p108
        %p228 = pneg %p105
        %p229 = pneg %p136
        %p230 = pneg %p133
        %s231 = sand.u32 %s123, 1
        %s232 = scalar_lea.sflag [#allocation4], %s231
        %s233 = sand.u32 %s123, 1
        %s234 = smul.addr %s233, 2
        %s235 = scalar_lea.vmem [#allocation7], %s234
        %p236 = scmp.lt.s32.totalorder %s25, 0
        %s237 = scalar_select %p236, %s25, 0
        %s238 = smul.addr %s237, 2
        %s239 = scalar_lea.vmem %s2, %s238
        %v240 = vld [vmem:[%s205] sm:$0x3]
        %v241 = vld [vmem:[#allocation5] sm:$0x3]
        %v242 = vld [vmem:[%s239] sm:$0x3]
        %243 = vrot.lane.b32.xlu0 %v240, 1
        %v244 = vpop.permute.xlu0 %243
        %245 = vrot.lane.b32.xlu0 %v240, 127
        %v246 = vpop.permute.xlu0 %245
        %v247 = vlaneseq
        %v248 = vand.u32 %v247, 127
        %v249 = vand.u32 %v248, 1
        %vm250 = vcmp.eq.s32.totalorder %v249, 0
        %v251 = vsel %vm250, %v246, %v244
        %v252 = vmul.f32 %v240, %v241
        %v253 = vmul.f32 %v251, %v242
        %v254 = vadd.f32 %v252, %v253
        %255 = vst [vmem:[%s235] sm:$0x3] %v254
        %s256 = sand.u32 %s123, 1
        %s257 = scalar_lea.sflag [#allocation4], %s256
        %s258 = sand.u32 %s123, 1
        %s259 = smul.addr %s258, 2
        %s260 = scalar_lea.vmem [#allocation7], %s259
        // Predicated region
        $region41: #{tpu_custom_call.1} parent=31 // pred_check
          %p261 = pneg %p133
        $region42: #{tpu_custom_call.1} parent=31 // pred_check_branch
          %263 = sbr.rel (%p261) target = $region44
        $region43: #{tpu_custom_call.1} parent=31 // pred_region
          %s265 = ssub.s32 32, 32
          %266 = vsyncadd %s257, %s265
          %s267 = sadd.s32 %s25, %s26
          %s268 = smul.addr %s267, 32
          %s269 = scalar_lea.hbm %s3, %s268
          %s271 = sshll.u32 %s260, 4
          %s272 = int_to_ptr.vmem [resolvable:$true] %s271
          %274 = dma.vmem_to_hbm [thread:$0]  %s272, 32, %s269, %s257
        $region44: #{tpu_custom_call.1} parent=31 // pred_fallthru
          _
      $region32: #{tpu_custom_call.1} parent=5 // pred_fallthru
        _
      %p275 = scmp.le.s32.totalorder 2, %s16
      // Predicated region
      $region45: #{tpu_custom_call.1} parent=5 // pred_check
        %p276 = pneg %p275
      $region46: #{tpu_custom_call.1} parent=5 // pred_check_branch
        %278 = sbr.rel (%p276) target = $region48
      $region47: #{tpu_custom_call.1} parent=5 // pred_region
        %s279 = ssub.s32 %s16, 2
        // Predicated region
        $region49: #{tpu_custom_call.1} parent=47 // pred_check
          %p280 = pneg %p139
        $region50: #{tpu_custom_call.1} parent=47 // pred_check_branch
          %282 = sbr.rel (%p280) target = $region52
        $region51: #{tpu_custom_call.1} parent=47 // pred_region
          %s283 = sand.u32 %s124, 1
          %s284 = scalar_lea.sflag [#allocation4], %s283
          %s285 = sand.u32 %s124, 1
          %s286 = smul.addr %s285, 2
          %s287 = scalar_lea.vmem [#allocation7], %s286
          %288 = dma.done %s284, 32
        $region52: #{tpu_custom_call.1} parent=47 // pred_fallthru
          _
      $region48: #{tpu_custom_call.1} parent=5 // pred_fallthru
        _
    $region6: #{tpu_custom_call.1} parent=1 // loop_footer
      %s20 = sadd.s32 1, %s16
    $region7: #{tpu_custom_call.1} parent=1 // loop_footer_branch
      %15 = sbr.rel target = $region3
    $region8: #{tpu_custom_call.1} parent=1 // loop_exit
      _
    %289 = vsyncpa [#allocation3], 1
    %s290 = scalar_lea.sflag [#allocation3], 1
    %291 = vsyncpa %s290, 1
    %292 = vsyncpa [#allocation6], 1
    %293 = vsyncpa [#allocation4], 1
    %s294 = scalar_lea.sflag [#allocation4], 1
    %295 = vsyncpa %s294, 1

</llo_original>
